<compile_context>
chip_gen: v7x
topology: tpu7x:2x2x1
jax: 0.10.0
libtpu: 0.0.40
codegen_flags: <defaults>
</compile_context>

<pallas_src>
import jax
import jax.numpy as jnp
from jax import lax
from jax.experimental import pallas as pl
from jax.experimental.pallas import tpu as pltpu


# ----------------------------------------------------------------------------
# Hardware-aware sizing helpers
# ----------------------------------------------------------------------------
def _vmem_caps():
    """Returns (physical_vmem, default_budget, vmem_limit_cap)."""
    phys = 64 << 20                              # conservative fallback (v7x-like)
    try:
        info = pltpu.get_tpu_info()
        phys = int(getattr(info, "vmem_capacity_bytes", phys))
    except Exception:
        pass
    if phys >= (100 << 20):                      # v5e / v6e: 128 MiB physical VMEM
        return phys, 48 << 20, 64 << 20
    return phys, 24 << 20, 30 << 20              # v7x: 64 MiB physical VMEM


def _pick_bt(B, bt_fit):
    """Batch elems per Path-A step: as many as fit, but keep >=2 grid steps
    (pipelining + v7x's 2 TensorCores); >=4 steps when B allows."""
    bt = max(1, min(int(bt_fit), B))
    if B >= 8:
        bt = min(bt, B // 4)
    elif B >= 2:
        bt = min(bt, B // 2)
    bt = max(bt, 1)
    while B % bt:
        bt -= 1
    return bt


def _pick_tile_hw(C, HW, itemsize, max_tile_hw, budget):
    """Largest 128-multiple tile dividing HW that fits the budget (phase 2
    holds in+out double-buffered: 4*C*tile*itemsize) and keeps each strided
    DMA row >= ~1 KiB (tile >= 512 for bf16, >= 256 for f32)."""
    if HW % 128 != 0:
        return None
    min_tile = 256 if itemsize >= 4 else 512
    min_tile = min(min_tile, HW)
    hi = HW if max_tile_hw is None else min(int(max_tile_hw), HW)
    hi = min(hi, budget // (4 * C * itemsize))
    hi -= hi % 128
    lo = max(min_tile, 128)
    for t in range(hi, lo - 1, -128):
        if HW % t == 0:
            return t
    return None


# ----------------------------------------------------------------------------
# Path A: single fused pass (2 HBM slab passes).  Reductions on the MXU.
# ----------------------------------------------------------------------------
def _globel_block_kernel(x_ref, wm_ref, bm_ref, w1t_ref, b1_ref, g_ref, be_ref,
                         w2_ref, b2_ref, o_ref):
    bt, C, _ = x_ref.shape
    xf = x_ref[...].astype(jnp.float32)                                # (bt,C,HW)

    # ---- spatial attention logits on the MXU: (bt,1,C)@(bt,C,HW)->(bt,1,HW)
    wm = jnp.broadcast_to(wm_ref[...], (bt, 1, C))
    logits = lax.dot_general(wm, xf, (((2,), (1,)), ((0,), (0,))),
                             preferred_element_type=jnp.float32) + bm_ref[0, 0]
    logits = logits - jnp.max(logits, axis=-1, keepdims=True)
    e = jnp.exp(logits)                                                # (bt,1,HW)
    den = jnp.sum(e, axis=-1, keepdims=True)                           # (bt,1,1)
    inv = pl.reciprocal(den, approx=True)                              # EUP slot
    inv = inv * (2.0 - den * inv)
    inv = inv * (2.0 - den * inv)                                      # ~f32 exact
    # ---- context on the MXU, contracting HW: (bt,C,HW)x(bt,1,HW)->(bt,C,1)
    ctx = lax.dot_general(xf, e, (((2,), (2,)), ((0,), (0,))),
                          preferred_element_type=jnp.float32) * inv

    # ---- channel_mul_conv: 1x1 conv -> LayerNorm(P) -> ReLU -> 1x1 conv ----
    t1 = jnp.sum(ctx * w1t_ref[...], axis=1, keepdims=True) + b1_ref[...]   # (bt,1,P)
    mu = jnp.mean(t1, axis=-1, keepdims=True)
    var = jnp.mean((t1 - mu) ** 2, axis=-1, keepdims=True)
    t1 = (t1 - mu) * lax.rsqrt(var + 1e-5) * g_ref[...] + be_ref[...]
    t1 = jnp.maximum(t1, 0.0)
    t2 = jnp.sum(t1 * w2_ref[...], axis=-1, keepdims=True) + b2_ref[...]    # (bt,C,1)
    mul = jax.nn.sigmoid(t2)                                                # (bt,C,1)

    # ---- fused output: x + x*mul == x*(1+mul) -------------------------------
    o_ref[...] = (xf * (1.0 + mul)).astype(o_ref.dtype)


def _single_pass_call(x2, kp, bt, vmem_limit):
    B, C, HW = x2.shape
    wm3, bm, w1t, b1r, g_r, be_r, w2, b2 = kp
    P = w1t.shape[1]
    itemsize = x2.dtype.itemsize
    return pl.pallas_call(
        _globel_block_kernel,
        out_shape=jax.ShapeDtypeStruct((B, C, HW), x2.dtype),
        grid=(B // bt,),
        in_specs=[
            pl.BlockSpec((bt, C, HW), lambda i: (i, 0, 0)),
            pl.BlockSpec((1, 1, C), lambda i: (0, 0, 0)),
            pl.BlockSpec((1, 1), lambda i: (0, 0)),
            pl.BlockSpec((C, P), lambda i: (0, 0)),
            pl.BlockSpec((1, P), lambda i: (0, 0)),
            pl.BlockSpec((1, P), lambda i: (0, 0)),
            pl.BlockSpec((1, P), lambda i: (0, 0)),
            pl.BlockSpec((C, P), lambda i: (0, 0)),
            pl.BlockSpec((C, 1), lambda i: (0, 0)),
        ],
        out_specs=pl.BlockSpec((bt, C, HW), lambda i: (i, 0, 0)),
        compiler_params=pltpu.CompilerParams(
            dimension_semantics=("parallel",),
            vmem_limit_bytes=int(vmem_limit)),
        cost_estimate=pl.CostEstimate(
            flops=int(6 * B * C * HW),
            transcendentals=int(B * HW + B * C),
            bytes_accessed=int(2 * B * C * HW * itemsize)),
    )(x2, wm3, bm, w1t, b1r, g_r, be_r, w2, b2)


# ----------------------------------------------------------------------------
# Path B: phase 1 = tiled online-softmax attention pool (MXU contractions),
#         tiny MLP in plain XLA, phase 2 = lane-dense tiled x*(1+mul) fusion.
# ----------------------------------------------------------------------------
def _pool_kernel(x_ref, wm_ref, bm_ref, ctx_ref, m_sc, l_sc, acc_sc):
    t = pl.program_id(1)

    @pl.when(t == 0)
    def _():
        m_sc[...] = jnp.full(m_sc.shape, -jnp.inf, jnp.float32)
        l_sc[...] = jnp.zeros(l_sc.shape, jnp.float32)
        acc_sc[...] = jnp.zeros(acc_sc.shape, jnp.float32)

    x = x_ref[0]                                          # (C, T) IO dtype
    w = wm_ref[...].astype(x.dtype)                       # (1, C)
    logits = jnp.dot(w, x, preferred_element_type=jnp.float32) + bm_ref[0, 0]

    m_prev = m_sc[...]                                    # (1,1)
    m_new = jnp.maximum(m_prev, jnp.max(logits, axis=-1, keepdims=True))
    alpha = jnp.exp(m_prev - m_new)
    e = jnp.exp(logits - m_new)                           # (1, T)
    l_sc[...] = alpha * l_sc[...] + jnp.sum(e, axis=-1, keepdims=True)
    contrib = lax.dot_general(e.astype(x.dtype), x, (((1,), (1,)), ((), ())),
                              preferred_element_type=jnp.float32)      # (1, C)
    acc_sc[...] = alpha * acc_sc[...] + contrib
    m_sc[...] = m_new

    @pl.when(t == pl.num_programs(1) - 1)
    def _():
        den = l_sc[...]
        inv = pl.reciprocal(den, approx=True)             # EUP
        inv = inv * (2.0 - den * inv)
        inv = inv * (2.0 - den * inv)
        ctx_ref[0] = acc_sc[...] * inv                    # (1, C) f32


def _phase1_call(x2, wm_row, bm, tile, vmem_limit):
    B, C, HW = x2.shape
    nt = HW // tile
    itemsize = x2.dtype.itemsize
    return pl.pallas_call(
        _pool_kernel,
        out_shape=jax.ShapeDtypeStruct((B, 1, C), jnp.float32),
        grid=(B, nt),
        in_specs=[
            pl.BlockSpec((1, C, tile), lambda b, t: (b, 0, t)),
            pl.BlockSpec((1, C), lambda b, t: (0, 0)),
            pl.BlockSpec((1, 1), lambda b, t: (0, 0)),
        ],
        out_specs=pl.BlockSpec((1, 1, C), lambda b, t: (b, 0, 0)),
        scratch_shapes=[
            pltpu.VMEM((1, 1), jnp.float32),   # running max
            pltpu.VMEM((1, 1), jnp.float32),   # running denom
            pltpu.VMEM((1, C), jnp.float32),   # running context
        ],
        compiler_params=pltpu.CompilerParams(
            dimension_semantics=("parallel", "arbitrary"),
            vmem_limit_bytes=int(vmem_limit)),
        cost_estimate=pl.CostEstimate(
            flops=int(4 * B * C * HW),
            transcendentals=int(B * HW),
            bytes_accessed=int(B * C * HW * itemsize + 4 * B * C)),
    )(x2, wm_row, bm)


def _mlp_mul(ctx, w1, b1, g, be, w2, b2):
    """channel_mul_conv on the pooled context (B,C) -> sigmoid gate (B,C)."""
    t1 = ctx @ w1.T + b1[:, 0]
    mu = t1.mean(axis=-1, keepdims=True)
    var = ((t1 - mu) ** 2).mean(axis=-1, keepdims=True)
    t1 = (t1 - mu) / jnp.sqrt(var + 1e-5) * g[:, 0] + be[:, 0]
    t1 = jnp.maximum(t1, 0.0)
    t2 = t1 @ w2.T + b2[:, 0]
    return jax.nn.sigmoid(t2)


def _fuse_kernel(x_ref, mul_ref, o_ref):
    # Compute in the IO dtype (bf16 VALU on v6e/v7x); only (1+mul) is f32.
    scale = (1.0 + mul_ref[0]).astype(o_ref.dtype)        # (C, 1)
    o_ref[0] = x_ref[0] * scale


def _phase2_call(x2, mul_col, tile, vmem_limit):
    B, C, HW = x2.shape
    nt = HW // tile
    itemsize = x2.dtype.itemsize
    return pl.pallas_call(
        _fuse_kernel,
        out_shape=jax.ShapeDtypeStruct((B, C, HW), x2.dtype),
        grid=(B, nt),
        in_specs=[
            pl.BlockSpec((1, C, tile), lambda b, t: (b, 0, t)),
            pl.BlockSpec((1, C, 1), lambda b, t: (b, 0, 0)),
        ],
        out_specs=pl.BlockSpec((1, C, tile), lambda b, t: (b, 0, t)),
        compiler_params=pltpu.CompilerParams(
            dimension_semantics=("parallel", "parallel"),
            vmem_limit_bytes=int(vmem_limit)),
        cost_estimate=pl.CostEstimate(
            flops=int(2 * B * C * HW),
            transcendentals=0,
            bytes_accessed=int(2 * B * C * HW * itemsize)),
    )(x2, mul_col)


# ----------------------------------------------------------------------------
# Wrapper
# ----------------------------------------------------------------------------
def globel_block(x, params, *, max_tile_hw=None, vmem_budget_bytes=None,
                 force_two_phase=False):
    """x: (B, C, H, W) NCHW (f32 or bf16). params in torch-native shapes:
    (wm (C,1), bm (1,1), w1 (P,C), b1 (P,1), gamma (P,1), beta (P,1),
     w2 (C,P), b2 (C,1))."""
    wm, bm, w1, b1, g, be, w2, b2 = params
    B, C, H, W = x.shape
    HW = H * W
    x2 = x.reshape(B, C, HW)
    itemsize = x2.dtype.itemsize
    param_bytes = sum(int(a.size) * a.dtype.itemsize for a in params)

    _phys, budget_def, cap = _vmem_caps()
    budget = int(vmem_budget_bytes) if vmem_budget_bytes else int(budget_def)
    budget = min(budget, cap - (2 << 20))       # never budget above the gen cap

    def _limit(need, strict=True):
        lim = int(min(cap, max(need + (2 << 20), 20 << 20)))
        if strict:
            assert lim >= need, (lim, need, cap)
        return lim

    # Honest Path-A accounting: in+out double-buffered in the IO dtype, one f32
    # working slab, slack for small temps; params double-buffer -> 2x.
    per_elem = 4 * itemsize + 6
    fixed = 2 * param_bytes + (2 << 20)
    need_one = C * HW * per_elem + fixed

    use_single = (not force_two_phase) and (need_one <= budget)
    if use_single:
        bt_fit = max(1, (budget - fixed) // (C * HW * per_elem))
        bt = _pick_bt(B, bt_fit)
        kp = (wm.reshape(1, 1, C), bm, w1.T, b1.T, g.T, be.T, w2, b2)
        out2 = _single_pass_call(
            x2, kp, bt, _limit(bt * C * HW * per_elem + fixed))
    else:
        tile = _pick_tile_hw(C, HW, itemsize, max_tile_hw, budget)
        if tile is None:
            # TODO(synk): HW not a multiple of 128 (or no feasible tile) needs
            # masked softmax tiles / channel tiling; fall back to the fused
            # kernel with one batch element per step (may exceed the cap for
            # genuinely huge slabs).
            kp = (wm.reshape(1, 1, C), bm, w1.T, b1.T, g.T, be.T, w2, b2)
            out2 = _single_pass_call(
                x2, kp, 1, _limit(C * HW * per_elem + fixed, strict=False))
        else:
            # TODO(synk): bt-batched phase 1 (block (bt,C,tile)) for large B.
            vlim1 = _limit(2 * C * tile * itemsize + (1 << 20))
            ctx3 = _phase1_call(x2, wm.T, bm, tile, vlim1)         # (B,1,C) f32
            mul = _mlp_mul(ctx3.reshape(B, C), w1, b1, g, be, w2, b2)
            mul_col = mul.reshape(B, C, 1)                         # fused by XLA
            vlim2 = _limit(4 * C * tile * itemsize + (1 << 20))
            out2 = _phase2_call(x2, mul_col, tile, vlim2)
    return out2.reshape(B, C, H, W)


# ----------------------------------------------------------------------------
# Pure-JAX reference matching the PyTorch forward semantics.
# ----------------------------------------------------------------------------
def reference(x, params):
    wm, bm, w1, b1, g, be, w2, b2 = params
    B, C, H, W = x.shape
    x2 = x.reshape(B, C, H * W).astype(jnp.float32)
    logits = jnp.einsum('c,bcn->bn', wm[:, 0], x2) + bm[0, 0]
    p = jax.nn.softmax(logits, axis=-1)
    ctx = jnp.einsum('bcn,bn->bc', x2, p)                       # (B, C)
    t1 = ctx @ w1.T + b1[:, 0]                                  # (B, P)
    mu = t1.mean(axis=-1, keepdims=True)
    var = ((t1 - mu) ** 2).mean(axis=-1, keepdims=True)
    t1 = (t1 - mu) / jnp.sqrt(var + 1e-5) * g[:, 0] + be[:, 0]
    t1 = jnp.maximum(t1, 0.0)
    t2 = t1 @ w2.T + b2[:, 0]                                   # (B, C)
    mul = jax.nn.sigmoid(t2)
    out = x2 * (1.0 + mul[:, :, None])
    return out.reshape(B, C, H, W)


if __name__ == "__main__":
    def make_params(keys, C, P):
        wm = jax.random.normal(keys[0], (C, 1), jnp.float32) * 0.3
        bm = jax.random.normal(keys[1], (1, 1), jnp.float32) * 0.1
        w1 = jax.random.normal(keys[2], (P, C), jnp.float32) * 0.3
        b1 = jax.random.normal(keys[3], (P, 1), jnp.float32) * 0.1
        g = 1.0 + 0.1 * jax.random.normal(keys[4], (P, 1), jnp.float32)
        be = 0.1 * jax.random.normal(keys[5], (P, 1), jnp.float32)
        w2 = jax.random.normal(keys[6], (C, P), jnp.float32) * 0.3
        b2 = jax.random.normal(keys[7], (C, 1), jnp.float32) * 0.1
        return (wm, bm, w1, b1, g, be, w2, b2)

    keys = jax.random.split(jax.random.PRNGKey(0), 30)

    # --- Test 1: small shape -> Path A (grid of 2 steps, bt=1) ---------------
    B, C, H, W = 2, 8, 16, 16
    P = max(1, C // 4)
    x = jax.random.normal(keys[0], (B, C, H, W), jnp.float32)
    params = make_params(keys[1:9], C, P)
    out = jax.block_until_ready(globel_block(x, params))
    ref = reference(x, params)
    assert out.shape == (B, C, H, W)
    assert jnp.allclose(out, ref, rtol=1e-3, atol=1e-3), "single-pass f32 mismatch"

    # --- Test 2: bf16 HBM IO (math stays f32 inside the kernel) --------------
    x_bf = x.astype(jnp.bfloat16)
    out_bf = jax.block_until_ready(globel_block(x_bf, params))
    ref_bf = reference(x_bf.astype(jnp.float32), params)
    assert out_bf.dtype == jnp.bfloat16
    assert jnp.allclose(out_bf.astype(jnp.float32), ref_bf,
                        rtol=2e-2, atol=2e-2), "bf16 IO mismatch"

    # --- Test 3: Path A with bt>1 batched blocks (B=8 -> bt=2, 4 steps) ------
    B3, C3, H3, W3 = 8, 16, 16, 16
    P3 = C3 // 4
    x3 = jax.random.normal(keys[9], (B3, C3, H3, W3), jnp.float32)
    params3 = make_params(keys[10:18], C3, P3)
    out3 = jax.block_until_ready(globel_block(x3, params3))
    ref3 = reference(x3, params3)
    assert jnp.allclose(out3, ref3, rtol=1e-3, atol=1e-3), "batched Path-A mismatch"

    # --- Test 4: two-phase path (tiled online softmax + XLA MLP + fusion) ----
    B4, C4, H4, W4 = 2, 128, 32, 32
    P4 = C4 // 4
    x4 = jax.random.normal(keys[18], (B4, C4, H4, W4), jnp.float32)
    params4 = make_params(keys[19:27], C4, P4)
    out4 = jax.block_until_ready(
        globel_block(x4, params4, force_two_phase=True, max_tile_hw=256))
    ref4 = reference(x4, params4)
    assert jnp.allclose(out4, ref4, rtol=1e-3, atol=1e-3), "two-phase mismatch"

    print("KERNEL_OK")
</pallas_src>

<mosaic_0001>
module attributes {stable_mosaic.version = 11 : i64} {
  func.func @_globel_block_kernel(%arg0: i32, %arg1: memref<1x8x256xf32, #tpu.memory_space<vmem>>, %arg2: memref<1x1x8xf32, #tpu.memory_space<vmem>>, %arg3: memref<1x1xf32, #tpu.memory_space<vmem>>, %arg4: memref<8x2xf32, #tpu.memory_space<vmem>>, %arg5: memref<1x2xf32, #tpu.memory_space<vmem>>, %arg6: memref<1x2xf32, #tpu.memory_space<vmem>>, %arg7: memref<1x2xf32, #tpu.memory_space<vmem>>, %arg8: memref<8x2xf32, #tpu.memory_space<vmem>>, %arg9: memref<8x1xf32, #tpu.memory_space<vmem>>, %arg10: memref<1x8x256xf32, #tpu.memory_space<vmem>>) attributes {dimension_semantics = [#tpu.dimension_semantics<parallel>], iteration_bounds = array<i64: 2>, scalar_prefetch = 0 : i64, scratch_operands = 0 : i64, tpu.core_type = #tpu.core_type<tc>, window_params = [{transform_indices = @transform_0, window_bounds = array<i64: 1, 8, 256>}, {pipeline_mode = #tpu.pipeline_mode<synchronous>, transform_indices = @transform_1, window_bounds = array<i64: 1, 1, 8>}, {pipeline_mode = #tpu.pipeline_mode<synchronous>, transform_indices = @transform_2, window_bounds = array<i64: 1, 1>}, {pipeline_mode = #tpu.pipeline_mode<synchronous>, transform_indices = @transform_3, window_bounds = array<i64: 8, 2>}, {pipeline_mode = #tpu.pipeline_mode<synchronous>, transform_indices = @transform_4, window_bounds = array<i64: 1, 2>}, {pipeline_mode = #tpu.pipeline_mode<synchronous>, transform_indices = @transform_5, window_bounds = array<i64: 1, 2>}, {pipeline_mode = #tpu.pipeline_mode<synchronous>, transform_indices = @transform_6, window_bounds = array<i64: 1, 2>}, {pipeline_mode = #tpu.pipeline_mode<synchronous>, transform_indices = @transform_7, window_bounds = array<i64: 8, 2>}, {pipeline_mode = #tpu.pipeline_mode<synchronous>, transform_indices = @transform_8, window_bounds = array<i64: 8, 1>}, {transform_indices = @transform_9, window_bounds = array<i64: 1, 8, 256>}]} {
    %c0 = arith.constant 0 : index
    %c0_0 = arith.constant 0 : index
    %c0_1 = arith.constant 0 : index
    %0 = vector.load %arg1[%c0, %c0_0, %c0_1] : memref<1x8x256xf32, #tpu.memory_space<vmem>>, vector<1x8x256xf32>
    %c0_2 = arith.constant 0 : index
    %c0_3 = arith.constant 0 : index
    %c0_4 = arith.constant 0 : index
    %1 = vector.load %arg2[%c0_2, %c0_3, %c0_4] : memref<1x1x8xf32, #tpu.memory_space<vmem>>, vector<1x1x8xf32>
    %cst = arith.constant dense<0.000000e+00> : vector<1x1x256xf32>
    %2 = tpu.matmul %1, %0, %cst {dimension_numbers = #tpu.dot_dimension_numbers<[2], [1], [1], [2], [0, 0, 0, 1, 1, 2], [0], [0]>} : vector<1x1x8xf32>, vector<1x8x256xf32>, vector<1x1x256xf32> -> vector<1x1x256xf32>
    %c0_5 = arith.constant 0 : index
    %c0_6 = arith.constant 0 : index
    %3 = vector.load %arg3[%c0_5, %c0_6] : memref<1x1xf32, #tpu.memory_space<vmem>>, vector<1x1xf32>
    %4 = vector.extract %3[0, 0] : f32 from vector<1x1xf32>
    %5 = vector.broadcast %4 : f32 to vector<1x1x256xf32>
    %6 = arith.addf %2, %5 : vector<1x1x256xf32>
    %cst_7 = arith.constant dense<0xFF800000> : vector<1x1xf32>
    %7 = vector.multi_reduction <maximumf>, %6, %cst_7 [2] : vector<1x1x256xf32> to vector<1x1xf32>
    %8 = vector.shape_cast %7 : vector<1x1xf32> to vector<1x1x1xf32>
    %9 = vector.broadcast %8 : vector<1x1x1xf32> to vector<1x1x256xf32>
    %10 = arith.subf %6, %9 : vector<1x1x256xf32>
    %11 = math.exp %10 : vector<1x1x256xf32>
    %cst_8 = arith.constant dense<0.000000e+00> : vector<1x1xf32>
    %12 = vector.multi_reduction <add>, %11, %cst_8 [2] : vector<1x1x256xf32> to vector<1x1xf32>
    %13 = vector.shape_cast %12 : vector<1x1xf32> to vector<1x1x1xf32>
    %14 = tpu.reciprocal %13 {approx = true} : vector<1x1x1xf32> -> vector<1x1x1xf32>
    %15 = arith.mulf %13, %14 : vector<1x1x1xf32>
    %cst_9 = arith.constant 2.000000e+00 : f32
    %16 = vector.broadcast %cst_9 : f32 to vector<1x1x1xf32>
    %17 = arith.subf %16, %15 : vector<1x1x1xf32>
    %18 = arith.mulf %14, %17 : vector<1x1x1xf32>
    %19 = arith.mulf %13, %18 : vector<1x1x1xf32>
    %cst_10 = arith.constant 2.000000e+00 : f32
    %20 = vector.broadcast %cst_10 : f32 to vector<1x1x1xf32>
    %21 = arith.subf %20, %19 : vector<1x1x1xf32>
    %22 = arith.mulf %18, %21 : vector<1x1x1xf32>
    %cst_11 = arith.constant dense<0.000000e+00> : vector<1x8x1xf32>
    %23 = tpu.matmul %0, %11, %cst_11 {dimension_numbers = #tpu.dot_dimension_numbers<[2], [2], [1], [1], [0, 0, 0, 1, 1, 1], [0], [0]>} : vector<1x8x256xf32>, vector<1x1x256xf32>, vector<1x8x1xf32> -> vector<1x8x1xf32>
    %24 = vector.broadcast %22 : vector<1x1x1xf32> to vector<1x8x1xf32>
    %25 = arith.mulf %23, %24 : vector<1x8x1xf32>
    %c0_12 = arith.constant 0 : index
    %c0_13 = arith.constant 0 : index
    %26 = vector.load %arg4[%c0_12, %c0_13] : memref<8x2xf32, #tpu.memory_space<vmem>>, vector<8x2xf32>
    %27 = vector.shape_cast %26 : vector<8x2xf32> to vector<1x8x2xf32>
    %28 = vector.broadcast %25 : vector<1x8x1xf32> to vector<1x8x2xf32>
    %29 = arith.mulf %28, %27 : vector<1x8x2xf32>
    %cst_14 = arith.constant dense<0.000000e+00> : vector<1x2xf32>
    %30 = vector.multi_reduction <add>, %29, %cst_14 [1] : vector<1x8x2xf32> to vector<1x2xf32>
    %31 = vector.shape_cast %30 : vector<1x2xf32> to vector<1x1x2xf32>
    %c0_15 = arith.constant 0 : index
    %c0_16 = arith.constant 0 : index
    %32 = vector.load %arg5[%c0_15, %c0_16] : memref<1x2xf32, #tpu.memory_space<vmem>>, vector<1x2xf32>
    %33 = vector.shape_cast %32 : vector<1x2xf32> to vector<1x1x2xf32>
    %34 = arith.addf %31, %33 : vector<1x1x2xf32>
    %cst_17 = arith.constant dense<0.000000e+00> : vector<1x1xf32>
    %35 = vector.multi_reduction <add>, %34, %cst_17 [2] : vector<1x1x2xf32> to vector<1x1xf32>
    %36 = vector.shape_cast %35 : vector<1x1xf32> to vector<1x1x1xf32>
    %cst_18 = arith.constant 2.000000e+00 : f32
    %37 = vector.broadcast %cst_18 : f32 to vector<1x1x1xf32>
    %38 = arith.divf %36, %37 : vector<1x1x1xf32>
    %39 = vector.broadcast %38 : vector<1x1x1xf32> to vector<1x1x2xf32>
    %40 = arith.subf %34, %39 : vector<1x1x2xf32>
    %41 = arith.mulf %40, %40 : vector<1x1x2xf32>
    %cst_19 = arith.constant dense<0.000000e+00> : vector<1x1xf32>
    %42 = vector.multi_reduction <add>, %41, %cst_19 [2] : vector<1x1x2xf32> to vector<1x1xf32>
    %43 = vector.shape_cast %42 : vector<1x1xf32> to vector<1x1x1xf32>
    %cst_20 = arith.constant 2.000000e+00 : f32
    %44 = vector.broadcast %cst_20 : f32 to vector<1x1x1xf32>
    %45 = arith.divf %43, %44 : vector<1x1x1xf32>
    %46 = vector.broadcast %38 : vector<1x1x1xf32> to vector<1x1x2xf32>
    %47 = arith.subf %34, %46 : vector<1x1x2xf32>
    %cst_21 = arith.constant 9.99999974E-6 : f32
    %48 = vector.broadcast %cst_21 : f32 to vector<1x1x1xf32>
    %49 = arith.addf %45, %48 : vector<1x1x1xf32>
    %50 = math.rsqrt %49 : vector<1x1x1xf32>
    %51 = vector.broadcast %50 : vector<1x1x1xf32> to vector<1x1x2xf32>
    %52 = arith.mulf %47, %51 : vector<1x1x2xf32>
    %c0_22 = arith.constant 0 : index
    %c0_23 = arith.constant 0 : index
    %53 = vector.load %arg6[%c0_22, %c0_23] : memref<1x2xf32, #tpu.memory_space<vmem>>, vector<1x2xf32>
    %54 = vector.shape_cast %53 : vector<1x2xf32> to vector<1x1x2xf32>
    %55 = arith.mulf %52, %54 : vector<1x1x2xf32>
    %c0_24 = arith.constant 0 : index
    %c0_25 = arith.constant 0 : index
    %56 = vector.load %arg7[%c0_24, %c0_25] : memref<1x2xf32, #tpu.memory_space<vmem>>, vector<1x2xf32>
    %57 = vector.shape_cast %56 : vector<1x2xf32> to vector<1x1x2xf32>
    %58 = arith.addf %55, %57 : vector<1x1x2xf32>
    %cst_26 = arith.constant 0.000000e+00 : f32
    %59 = vector.broadcast %cst_26 : f32 to vector<1x1x2xf32>
    %60 = arith.maximumf %58, %59 : vector<1x1x2xf32>
    %c0_27 = arith.constant 0 : index
    %c0_28 = arith.constant 0 : index
    %61 = vector.load %arg8[%c0_27, %c0_28] : memref<8x2xf32, #tpu.memory_space<vmem>>, vector<8x2xf32>
    %62 = vector.shape_cast %61 : vector<8x2xf32> to vector<1x8x2xf32>
    %63 = vector.broadcast %60 : vector<1x1x2xf32> to vector<1x8x2xf32>
    %64 = arith.mulf %63, %62 : vector<1x8x2xf32>
    %cst_29 = arith.constant dense<0.000000e+00> : vector<1x8xf32>
    %65 = vector.multi_reduction <add>, %64, %cst_29 [2] : vector<1x8x2xf32> to vector<1x8xf32>
    %66 = vector.shape_cast %65 : vector<1x8xf32> to vector<1x8x1xf32>
    %c0_30 = arith.constant 0 : index
    %c0_31 = arith.constant 0 : index
    %67 = vector.load %arg9[%c0_30, %c0_31] : memref<8x1xf32, #tpu.memory_space<vmem>>, vector<8x1xf32>
    %68 = vector.shape_cast %67 : vector<8x1xf32> to vector<1x8x1xf32>
    %69 = arith.addf %66, %68 : vector<1x8x1xf32>
    %70 = arith.negf %69 : vector<1x8x1xf32>
    %71 = math.exp %70 : vector<1x8x1xf32>
    %cst_32 = arith.constant 1.000000e+00 : f32
    %72 = vector.broadcast %cst_32 : f32 to vector<1x8x1xf32>
    %73 = arith.addf %72, %71 : vector<1x8x1xf32>
    %74 = arith.divf %72, %73 : vector<1x8x1xf32>
    %cst_33 = arith.constant 1.000000e+00 : f32
    %75 = vector.broadcast %cst_33 : f32 to vector<1x8x1xf32>
    %76 = arith.addf %75, %74 : vector<1x8x1xf32>
    %77 = vector.broadcast %76 : vector<1x8x1xf32> to vector<1x8x256xf32>
    %78 = arith.mulf %0, %77 : vector<1x8x256xf32>
    %c0_34 = arith.constant 0 : index
    %c0_35 = arith.constant 0 : index
    %c0_36 = arith.constant 0 : index
    %79 = vector.load %arg10[%c0_34, %c0_35, %c0_36] : memref<1x8x256xf32, #tpu.memory_space<vmem>>, vector<1x8x256xf32>
    tpu.vector_store %arg10[%c0_34, %c0_35, %c0_36], %78 {strides = array<i32>} : memref<1x8x256xf32, #tpu.memory_space<vmem>>, vector<1x8x256xf32>,
    return
  }
  func.func @transform_0(%arg0: i32) -> (i32, i32, i32) {
    %c0_i32 = arith.constant 0 : i32
    %c0_i32_0 = arith.constant 0 : i32
    %c0_i32_1 = arith.constant 0 : i32
    return %arg0, %c0_i32, %c0_i32_0 : i32, i32, i32
  }
  func.func @transform_1(%arg0: i32) -> (i32, i32, i32) {
    %c0_i32 = arith.constant 0 : i32
    %c0_i32_0 = arith.constant 0 : i32
    %c0_i32_1 = arith.constant 0 : i32
    %c0_i32_2 = arith.constant 0 : i32
    return %c0_i32, %c0_i32_0, %c0_i32_1 : i32, i32, i32
  }
  func.func @transform_2(%arg0: i32) -> (i32, i32) {
    %c0_i32 = arith.constant 0 : i32
    %c0_i32_0 = arith.constant 0 : i32
    %c0_i32_1 = arith.constant 0 : i32
    return %c0_i32, %c0_i32_0 : i32, i32
  }
  func.func @transform_3(%arg0: i32) -> (i32, i32) {
    %c0_i32 = arith.constant 0 : i32
    %c0_i32_0 = arith.constant 0 : i32
    %c0_i32_1 = arith.constant 0 : i32
    return %c0_i32, %c0_i32_0 : i32, i32
  }
  func.func @transform_4(%arg0: i32) -> (i32, i32) {
    %c0_i32 = arith.constant 0 : i32
    %c0_i32_0 = arith.constant 0 : i32
    %c0_i32_1 = arith.constant 0 : i32
    return %c0_i32, %c0_i32_0 : i32, i32
  }
  func.func @transform_5(%arg0: i32) -> (i32, i32) {
    %c0_i32 = arith.constant 0 : i32
    %c0_i32_0 = arith.constant 0 : i32
    %c0_i32_1 = arith.constant 0 : i32
    return %c0_i32, %c0_i32_0 : i32, i32
  }
  func.func @transform_6(%arg0: i32) -> (i32, i32) {
    %c0_i32 = arith.constant 0 : i32
    %c0_i32_0 = arith.constant 0 : i32
    %c0_i32_1 = arith.constant 0 : i32
    return %c0_i32, %c0_i32_0 : i32, i32
  }
  func.func @transform_7(%arg0: i32) -> (i32, i32) {
    %c0_i32 = arith.constant 0 : i32
    %c0_i32_0 = arith.constant 0 : i32
    %c0_i32_1 = arith.constant 0 : i32
    return %c0_i32, %c0_i32_0 : i32, i32
  }
  func.func @transform_8(%arg0: i32) -> (i32, i32) {
    %c0_i32 = arith.constant 0 : i32
    %c0_i32_0 = arith.constant 0 : i32
    %c0_i32_1 = arith.constant 0 : i32
    return %c0_i32, %c0_i32_0 : i32, i32
  }
  func.func @transform_9(%arg0: i32) -> (i32, i32, i32) {
    %c0_i32 = arith.constant 0 : i32
    %c0_i32_0 = arith.constant 0 : i32
    %c0_i32_1 = arith.constant 0 : i32
    return %arg0, %c0_i32, %c0_i32_0 : i32, i32, i32
  }
}

</mosaic_0001>

<llo_original>
// kernel: tpu_custom_call.1
$region0: #{tpu_custom_call.1}
  #allocation0 [shape = 'u32[]', space=smem, size = 0x4, offset = 0x4, fixed_abs, tag = 'smem constant byte address 0x4 - core index']
  #allocation1 [shape = 'u32[144,128]{1,0:T(1,128)}', space=vmem, size = 0x12000, scoped, tag = 'internal scratch']
  #allocation2 [shape = 'f32[1,1]{1,0:T(1,128)S(1)}', space=vmem, size = 0x200, scoped, tag = 'scoped memory for tpu_custom_call.1']
  %s0 = inlined_call_operand.vmem [shape: f32[2,8,256], index: 0, kind: input, shape index: {}]
  %s1 = inlined_call_operand.hbm [shape: f32[1,1,8], index: 1, kind: input, shape index: {}]
  %s2 = inlined_call_operand.<no memory space> [shape: f32[1,1], index: 2, kind: input, shape index: {}]
  %s3 = inlined_call_operand.vmem [shape: f32[8,2], index: 3, kind: input, shape index: {}]
  %s4 = inlined_call_operand.vmem [shape: f32[1,2], index: 4, kind: input, shape index: {}]
  %s5 = inlined_call_operand.vmem [shape: f32[1,2], index: 5, kind: input, shape index: {}]
  %s6 = inlined_call_operand.vmem [shape: f32[1,2], index: 6, kind: input, shape index: {}]
  %s7 = inlined_call_operand.vmem [shape: f32[8,2], index: 7, kind: input, shape index: {}]
  %s8 = inlined_call_operand.vmem [shape: f32[8,1], index: 8, kind: input, shape index: {}]
  %s9 = inlined_call_operand.hbm [shape: f32[2,8,256], index: 9, kind: output, shape index: {}]
  %s10 = sld [smem:[#allocation0]]
  $region73: #{tpu_custom_call.1} parent=0
    _
  %s12 = ssub.s32 1, %s10
  %s13 = scalar_select 0, %s12, %s10
  %v14 = vstv %s2
  %15 = vst [vmem:[#allocation2] sm:$0x1] %v14
  $region1: #{tpu_custom_call.1} parent=0
    #allocation3 [shape = 'u8[512]{0}', space=vmem, size = 0x400, scoped, tag = 'input window, operand 1, single buffered']
    #allocation4 [shape = 's32[2]{0}', space=sflag, size = 0x8, scoped, tag = 'scoped memory for tpu_custom_call.1']
    #allocation5 [shape = 's32[2]{0}', space=sflag, size = 0x8, scoped, tag = 'scoped memory for tpu_custom_call.1']
    #allocation6 [shape = 'u8[16384]{0}', space=vmem, size = 0x4000, scoped, tag = 'output window, operand 0']
    %16 = vsyncpa [#allocation4], 0
    %17 = vsyncpa [#allocation5], 0
    %s18 = scalar_lea.sflag [#allocation5], 1
    %19 = vsyncpa %s18, 0
    loop: start=0, step=1, limit=4
    $region2: #{tpu_custom_call.1} parent=1 // loop_pre_header
      _
    $region3: #{tpu_custom_call.1} parent=1 // loop_header
      %s21 = sphi 0, %s25
      %p22 = scmp.ge.s32.totalorder %s21, 4
      %s31 = sphi 0, %s33
      %s34 = sphi 0, %s31
      %s35 = sphi 0, %s34
      %s51 = sphi 0, %s35
      %s55 = sphi 0, %s55
      %s57 = sphi 0, %s55
      %s58 = sphi 0, %s57
      %s72 = sphi 0, %s58
      %s76 = sphi 0, %s76
      %s78 = sphi 0, %s76
      %s79 = sphi 0, %s78
      %s93 = sphi 0, %s79
      %s97 = sphi 0, %s97
      %s99 = sphi 0, %s97
      %s100 = sphi 0, %s99
      %s114 = sphi 0, %s100
      %s118 = sphi 0, %s118
      %s120 = sphi 0, %s118
      %s121 = sphi 0, %s120
      %s135 = sphi 0, %s121
      %s139 = sphi 0, %s139
      %s141 = sphi 0, %s139
      %s142 = sphi 0, %s141
      %s156 = sphi 0, %s142
      %s160 = sphi 0, %s160
      %s162 = sphi 0, %s160
      %s163 = sphi 0, %s162
      %s177 = sphi 0, %s163
      %s181 = sphi 0, %s181
      %s183 = sphi 0, %s181
      %s184 = sphi 0, %s183
      %s198 = sphi 0, %s184
      %s202 = sphi 0, %s202
      %s204 = sphi 0, %s202
      %s205 = sphi 0, %s204
      %s219 = sphi 0, %s205
      %s225 = sphi 0, %s227
      %s228 = sphi 0, %s225
      %s229 = sphi 0, %s228
      %s245 = sphi 0, %s229
    $region4: #{tpu_custom_call.1} parent=1 // loop_header_branch
      %24 = sbr.rel (%p22) target = $region8
    $region5: #{tpu_custom_call.1} parent=1 // loop_body
      %s26 = ssub.s32 %s21, 1
      %s27 = ssub.s32 %s21, 2
      %s28 = sadd.s32 %s21, 1
      %s29 = ssub.s32 %s21, %s28
      %p30 = scmp.eq.s32.totalorder %s29, 0
      %s32 = sadd.s32 %s31, 1
      %s33 = scalar_select %p30, %s31, %s32
      %p36 = pneg %p30
      %p37 = scmp.eq.s32.totalorder %s21, 1
      %p38 = por %p36, %p37
      %p39 = scmp.ne.s32.totalorder %s31, %s34
      %p40 = scmp.eq.s32.totalorder %s21, 0
      %p41 = por %p39, %p40
      %p42 = scmp.ne.s32.totalorder %s31, %s34
      %p43 = scmp.eq.s32.totalorder %s26, 1
      %p44 = por %p42, %p43
      %p45 = scmp.ne.s32.totalorder %s34, %s35
      %p46 = scmp.eq.s32.totalorder %s26, 0
      %p47 = por %p45, %p46
      %p48 = scmp.ne.s32.totalorder %s34, %s35
      %p49 = scmp.eq.s32.totalorder %s27, 1
      %p50 = por %p48, %p49
      %p52 = scmp.ne.s32.totalorder %s35, %s51
      %p53 = scmp.eq.s32.totalorder %s27, 0
      %p54 = por %p52, %p53
      %s56 = sadd.s32 %s55, 1
      %p59 = scmp.eq.s32.totalorder %s21, 1
      %p60 = scmp.ne.s32.totalorder %s55, %s57
      %p61 = scmp.eq.s32.totalorder %s21, 0
      %p62 = por %p60, %p61
      %p63 = scmp.ne.s32.totalorder %s55, %s57
      %p64 = scmp.eq.s32.totalorder %s26, 1
      %p65 = por %p63, %p64
      %p66 = scmp.ne.s32.totalorder %s57, %s58
      %p67 = scmp.eq.s32.totalorder %s26, 0
      %p68 = por %p66, %p67
      %p69 = scmp.ne.s32.totalorder %s57, %s58
      %p70 = scmp.eq.s32.totalorder %s27, 1
      %p71 = por %p69, %p70
      %p73 = scmp.ne.s32.totalorder %s58, %s72
      %p74 = scmp.eq.s32.totalorder %s27, 0
      %p75 = por %p73, %p74
      %s77 = sadd.s32 %s76, 1
      %p80 = scmp.eq.s32.totalorder %s21, 1
      %p81 = scmp.ne.s32.totalorder %s76, %s78
      %p82 = scmp.eq.s32.totalorder %s21, 0
      %p83 = por %p81, %p82
      %p84 = scmp.ne.s32.totalorder %s76, %s78
      %p85 = scmp.eq.s32.totalorder %s26, 1
      %p86 = por %p84, %p85
      %p87 = scmp.ne.s32.totalorder %s78, %s79
      %p88 = scmp.eq.s32.totalorder %s26, 0
      %p89 = por %p87, %p88
      %p90 = scmp.ne.s32.totalorder %s78, %s79
      %p91 = scmp.eq.s32.totalorder %s27, 1
      %p92 = por %p90, %p91
      %p94 = scmp.ne.s32.totalorder %s79, %s93
      %p95 = scmp.eq.s32.totalorder %s27, 0
      %p96 = por %p94, %p95
      %s98 = sadd.s32 %s97, 1
      %p101 = scmp.eq.s32.totalorder %s21, 1
      %p102 = scmp.ne.s32.totalorder %s97, %s99
      %p103 = scmp.eq.s32.totalorder %s21, 0
      %p104 = por %p102, %p103
      %p105 = scmp.ne.s32.totalorder %s97, %s99
      %p106 = scmp.eq.s32.totalorder %s26, 1
      %p107 = por %p105, %p106
      %p108 = scmp.ne.s32.totalorder %s99, %s100
      %p109 = scmp.eq.s32.totalorder %s26, 0
      %p110 = por %p108, %p109
      %p111 = scmp.ne.s32.totalorder %s99, %s100
      %p112 = scmp.eq.s32.totalorder %s27, 1
      %p113 = por %p111, %p112
      %p115 = scmp.ne.s32.totalorder %s100, %s114
      %p116 = scmp.eq.s32.totalorder %s27, 0
      %p117 = por %p115, %p116
      %s119 = sadd.s32 %s118, 1
      %p122 = scmp.eq.s32.totalorder %s21, 1
      %p123 = scmp.ne.s32.totalorder %s118, %s120
      %p124 = scmp.eq.s32.totalorder %s21, 0
      %p125 = por %p123, %p124
      %p126 = scmp.ne.s32.totalorder %s118, %s120
      %p127 = scmp.eq.s32.totalorder %s26, 1
      %p128 = por %p126, %p127
      %p129 = scmp.ne.s32.totalorder %s120, %s121
      %p130 = scmp.eq.s32.totalorder %s26, 0
      %p131 = por %p129, %p130
      %p132 = scmp.ne.s32.totalorder %s120, %s121
      %p133 = scmp.eq.s32.totalorder %s27, 1
      %p134 = por %p132, %p133
      %p136 = scmp.ne.s32.totalorder %s121, %s135
      %p137 = scmp.eq.s32.totalorder %s27, 0
      %p138 = por %p136, %p137
      %s140 = sadd.s32 %s139, 1
      %p143 = scmp.eq.s32.totalorder %s21, 1
      %p144 = scmp.ne.s32.totalorder %s139, %s141
      %p145 = scmp.eq.s32.totalorder %s21, 0
      %p146 = por %p144, %p145
      %p147 = scmp.ne.s32.totalorder %s139, %s141
      %p148 = scmp.eq.s32.totalorder %s26, 1
      %p149 = por %p147, %p148
      %p150 = scmp.ne.s32.totalorder %s141, %s142
      %p151 = scmp.eq.s32.totalorder %s26, 0
      %p152 = por %p150, %p151
      %p153 = scmp.ne.s32.totalorder %s141, %s142
      %p154 = scmp.eq.s32.totalorder %s27, 1
      %p155 = por %p153, %p154
      %p157 = scmp.ne.s32.totalorder %s142, %s156
      %p158 = scmp.eq.s32.totalorder %s27, 0
      %p159 = por %p157, %p158
      %s161 = sadd.s32 %s160, 1
      %p164 = scmp.eq.s32.totalorder %s21, 1
      %p165 = scmp.ne.s32.totalorder %s160, %s162
      %p166 = scmp.eq.s32.totalorder %s21, 0
      %p167 = por %p165, %p166
      %p168 = scmp.ne.s32.totalorder %s160, %s162
      %p169 = scmp.eq.s32.totalorder %s26, 1
      %p170 = por %p168, %p169
      %p171 = scmp.ne.s32.totalorder %s162, %s163
      %p172 = scmp.eq.s32.totalorder %s26, 0
      %p173 = por %p171, %p172
      %p174 = scmp.ne.s32.totalorder %s162, %s163
      %p175 = scmp.eq.s32.totalorder %s27, 1
      %p176 = por %p174, %p175
      %p178 = scmp.ne.s32.totalorder %s163, %s177
      %p179 = scmp.eq.s32.totalorder %s27, 0
      %p180 = por %p178, %p179
      %s182 = sadd.s32 %s181, 1
      %p185 = scmp.eq.s32.totalorder %s21, 1
      %p186 = scmp.ne.s32.totalorder %s181, %s183
      %p187 = scmp.eq.s32.totalorder %s21, 0
      %p188 = por %p186, %p187
      %p189 = scmp.ne.s32.totalorder %s181, %s183
      %p190 = scmp.eq.s32.totalorder %s26, 1
      %p191 = por %p189, %p190
      %p192 = scmp.ne.s32.totalorder %s183, %s184
      %p193 = scmp.eq.s32.totalorder %s26, 0
      %p194 = por %p192, %p193
      %p195 = scmp.ne.s32.totalorder %s183, %s184
      %p196 = scmp.eq.s32.totalorder %s27, 1
      %p197 = por %p195, %p196
      %p199 = scmp.ne.s32.totalorder %s184, %s198
      %p200 = scmp.eq.s32.totalorder %s27, 0
      %p201 = por %p199, %p200
      %s203 = sadd.s32 %s202, 1
      %p206 = scmp.eq.s32.totalorder %s21, 1
      %p207 = scmp.ne.s32.totalorder %s202, %s204
      %p208 = scmp.eq.s32.totalorder %s21, 0
      %p209 = por %p207, %p208
      %p210 = scmp.ne.s32.totalorder %s202, %s204
      %p211 = scmp.eq.s32.totalorder %s26, 1
      %p212 = por %p210, %p211
      %p213 = scmp.ne.s32.totalorder %s204, %s205
      %p214 = scmp.eq.s32.totalorder %s26, 0
      %p215 = por %p213, %p214
      %p216 = scmp.ne.s32.totalorder %s204, %s205
      %p217 = scmp.eq.s32.totalorder %s27, 1
      %p218 = por %p216, %p217
      %p220 = scmp.ne.s32.totalorder %s205, %s219
      %p221 = scmp.eq.s32.totalorder %s27, 0
      %p222 = por %p220, %p221
      %s223 = ssub.s32 %s21, %s28
      %p224 = scmp.eq.s32.totalorder %s223, 0
      %s226 = sadd.s32 %s225, 1
      %s227 = scalar_select %p224, %s225, %s226
      %p230 = pneg %p224
      %p231 = scmp.eq.s32.totalorder %s21, 1
      %p232 = por %p230, %p231
      %p233 = scmp.ne.s32.totalorder %s225, %s228
      %p234 = scmp.eq.s32.totalorder %s21, 0
      %p235 = por %p233, %p234
      %p236 = scmp.ne.s32.totalorder %s225, %s228
      %p237 = scmp.eq.s32.totalorder %s26, 1
      %p238 = por %p236, %p237
      %p239 = scmp.ne.s32.totalorder %s228, %s229
      %p240 = scmp.eq.s32.totalorder %s26, 0
      %p241 = por %p239, %p240
      %p242 = scmp.ne.s32.totalorder %s228, %s229
      %p243 = scmp.eq.s32.totalorder %s27, 1
      %p244 = por %p242, %p243
      %p246 = scmp.ne.s32.totalorder %s229, %s245
      %p247 = scmp.eq.s32.totalorder %s27, 0
      %p248 = por %p246, %p247
      %p249 = scmp.le.s32.totalorder 1, %s21
      %p250 = scmp.lt.s32.totalorder %s21, 3
      %p251 = pnand %p249, %p250
      %p252 = pneg %p251
      // Predicated region
      $region9: #{tpu_custom_call.1} parent=5 // pred_check
        _
      $region10: #{tpu_custom_call.1} parent=5 // pred_check_branch
        %254 = sbr.rel (%p251) target = $region12
      $region11: #{tpu_custom_call.1} parent=5 // pred_region
        %s255 = ssub.s32 %s21, 1
        // Predicated region
        $region13: #{tpu_custom_call.1} parent=11 // pred_check
          %p256 = pneg %p68
        $region14: #{tpu_custom_call.1} parent=11 // pred_check_branch
          %258 = sbr.rel (%p256) target = $region16
        $region15: #{tpu_custom_call.1} parent=11 // pred_region
          %s260 = ssub.s32 16, 16
          %261 = vsyncadd [#allocation4], %s260
          %s263 = sshll.u32 [#allocation3], 4
          %s264 = int_to_ptr.vmem [resolvable:$true] %s263
          %266 = dma.hbm_to_vmem [thread:$0]  %s1, 16, %s264, [#allocation4]
        $region16: #{tpu_custom_call.1} parent=11 // pred_fallthru
          _
        // Predicated region
        $region17: #{tpu_custom_call.1} parent=11 // pred_check
          %p267 = pneg %p89
        $region18: #{tpu_custom_call.1} parent=11 // pred_check_branch
          %269 = sbr.rel (%p267) target = $region20
        $region19: #{tpu_custom_call.1} parent=11 // pred_region
          _
        $region20: #{tpu_custom_call.1} parent=11 // pred_fallthru
          _
        // Predicated region
        $region21: #{tpu_custom_call.1} parent=11 // pred_check
          %p270 = pneg %p110
        $region22: #{tpu_custom_call.1} parent=11 // pred_check_branch
          %272 = sbr.rel (%p270) target = $region24
        $region23: #{tpu_custom_call.1} parent=11 // pred_region
          _
        $region24: #{tpu_custom_call.1} parent=11 // pred_fallthru
          _
        // Predicated region
        $region25: #{tpu_custom_call.1} parent=11 // pred_check
          %p273 = pneg %p131
        $region26: #{tpu_custom_call.1} parent=11 // pred_check_branch
          %275 = sbr.rel (%p273) target = $region28
        $region27: #{tpu_custom_call.1} parent=11 // pred_region
          _
        $region28: #{tpu_custom_call.1} parent=11 // pred_fallthru
          _
        // Predicated region
        $region29: #{tpu_custom_call.1} parent=11 // pred_check
          %p276 = pneg %p152
        $region30: #{tpu_custom_call.1} parent=11 // pred_check_branch
          %278 = sbr.rel (%p276) target = $region32
        $region31: #{tpu_custom_call.1} parent=11 // pred_region
          _
        $region32: #{tpu_custom_call.1} parent=11 // pred_fallthru
          _
        // Predicated region
        $region33: #{tpu_custom_call.1} parent=11 // pred_check
          %p279 = pneg %p173
        $region34: #{tpu_custom_call.1} parent=11 // pred_check_branch
          %281 = sbr.rel (%p279) target = $region36
        $region35: #{tpu_custom_call.1} parent=11 // pred_region
          _
        $region36: #{tpu_custom_call.1} parent=11 // pred_fallthru
          _
        // Predicated region
        $region37: #{tpu_custom_call.1} parent=11 // pred_check
          %p282 = pneg %p194
        $region38: #{tpu_custom_call.1} parent=11 // pred_check_branch
          %284 = sbr.rel (%p282) target = $region40
        $region39: #{tpu_custom_call.1} parent=11 // pred_region
          _
        $region40: #{tpu_custom_call.1} parent=11 // pred_fallthru
          _
        // Predicated region
        $region41: #{tpu_custom_call.1} parent=11 // pred_check
          %p285 = pneg %p215
        $region42: #{tpu_custom_call.1} parent=11 // pred_check_branch
          %287 = sbr.rel (%p285) target = $region44
        $region43: #{tpu_custom_call.1} parent=11 // pred_region
          _
        $region44: #{tpu_custom_call.1} parent=11 // pred_fallthru
          _
      $region12: #{tpu_custom_call.1} parent=5 // pred_fallthru
        _
      %p288 = scmp.lt.s32.totalorder %s21, 2
      // Predicated region
      $region45: #{tpu_custom_call.1} parent=5 // pred_check
        %p289 = pneg %p288
      $region46: #{tpu_custom_call.1} parent=5 // pred_check_branch
        %291 = sbr.rel (%p289) target = $region48
      $region47: #{tpu_custom_call.1} parent=5 // pred_region
        // Predicated region
        $region49: #{tpu_custom_call.1} parent=47 // pred_check
          %p292 = pneg %p41
        $region50: #{tpu_custom_call.1} parent=47 // pred_check_branch
          %294 = sbr.rel (%p292) target = $region52
        $region51: #{tpu_custom_call.1} parent=47 // pred_region
          %p295 = scmp.lt.s32.totalorder %s21, 1
          %s296 = scalar_select %p295, %s21, 1
          %s297 = smul.addr %s296, 2
          %s298 = smul.addr %s297, 8
          %s299 = scalar_lea.vmem %s0, %s298
        $region52: #{tpu_custom_call.1} parent=47 // pred_fallthru
          _
      $region48: #{tpu_custom_call.1} parent=5 // pred_fallthru
        _
      %p300 = scmp.le.s32.totalorder 1, %s21
      %p301 = scmp.lt.s32.totalorder %s21, 3
      %p302 = pnand %p300, %p301
      %p303 = pneg %p302
      // Predicated region
      $region53: #{tpu_custom_call.1} parent=5 // pred_check
        _
      $region54: #{tpu_custom_call.1} parent=5 // pred_check_branch
        %305 = sbr.rel (%p302) target = $region56
      $region55: #{tpu_custom_call.1} parent=5 // pred_region
        %s306 = ssub.s32 %s21, 1
        // Predicated region
        $region57: #{tpu_custom_call.1} parent=55 // pred_check
          %p307 = pneg %p68
        $region58: #{tpu_custom_call.1} parent=55 // pred_check_branch
          %309 = sbr.rel (%p307) target = $region60
        $region59: #{tpu_custom_call.1} parent=55 // pred_region
          %310 = dma.done [#allocation4], 16
        $region60: #{tpu_custom_call.1} parent=55 // pred_fallthru
          _
        %p311 = scmp.lt.s32.totalorder %s26, 1
        %s312 = scalar_select %p311, %s26, 1
        %s313 = smul.addr %s312, 2
        %s314 = smul.addr %s313, 8
        %s315 = scalar_lea.vmem %s0, %s314
        %p316 = pneg %p47
        %p317 = pneg %p44
        %p318 = pneg %p68
        %p319 = pneg %p65
        %p320 = pneg %p89
        %p321 = pneg %p86
        %p322 = pneg %p110
        %p323 = pneg %p107
        %p324 = pneg %p131
        %p325 = pneg %p128
        %p326 = pneg %p152
        %p327 = pneg %p149
        %p328 = pneg %p173
        %p329 = pneg %p170
        %p330 = pneg %p194
        %p331 = pneg %p191
        %p332 = pneg %p215
        %p333 = pneg %p212
        %p334 = pneg %p241
        %p335 = pneg %p238
        %s336 = sand.u32 %s228, 1
        %s337 = scalar_lea.sflag [#allocation5], %s336
        %s338 = sand.u32 %s228, 1
        %s339 = smul.addr %s338, 16
        %s340 = scalar_lea.vmem [#allocation6], %s339
        %p341 = scmp.lt.s32.totalorder %s26, 1
        %s342 = scalar_select %p341, %s26, 1
        %s343 = smul.addr %s342, 2
        %s344 = smul.addr %s343, 8
        %s345 = scalar_lea.vmem %s0, %s344
        %v346 = vld [vmem:[%s345] sm:$0xff]
        %v347 = vld [vmem:[%s345 + $0x8] sm:$0xff]
        %v348 = vld [vmem:[#allocation3] sm:$0x1]
        %v349 = vld [vmem:[#allocation2] sm:$0x1]
        %s350 = vtos %v349
        %v351 = vstv %s350
        %vm352 = vcmask 64512
        %v354 = vsel %vm352, %v348, 0
        %356 = vmatprep.subr.mxu0 %v347
        %357 = vmatpush1.msra.mxu0 %v346
        %358 = vmatprep.subr.mxu0 0.0
        %359 = vmatpush1.msra.mxu0 0.0
        %360 = vmatprep.subr.mxu0 0.0
        %361 = vmatpush1.msra.mxu0 0.0
        %362 = vmatprep.subr.mxu0 0.0
        %363 = vmatpush1.msra.mxu0 0.0
        %364 = vmatprep.subr.mxu0 0.0
        %365 = vmatpush1.msra.mxu0 0.0
        %366 = vmatprep.subr.mxu0 0.0
        %367 = vmatpush1.msra.mxu0 0.0
        %368 = vmatprep.subr.mxu0 0.0
        %369 = vmatpush1.msra.mxu0 0.0
        %370 = vmatprep.subr.mxu0 0.0
        %371 = vmatpush1.msra.mxu0 0.0
        %372 = vmatprep.subr.mxu0 0.0
        %373 = vmatpush1.msra.mxu0 0.0
        %374 = vmatprep.subr.mxu0 0.0
        %375 = vmatpush1.msra.mxu0 0.0
        %376 = vmatprep.subr.mxu0 0.0
        %377 = vmatpush1.msra.mxu0 0.0
        %378 = vmatprep.subr.mxu0 0.0
        %379 = vmatpush1.msra.mxu0 0.0
        %380 = vmatprep.subr.mxu0 0.0
        %381 = vmatpush1.msra.mxu0 0.0
        %382 = vmatprep.subr.mxu0 0.0
        %383 = vmatpush1.msra.mxu0 0.0
        %384 = vmatprep.subr.mxu0 0.0
        %385 = vmatpush1.msra.mxu0 0.0
        %386 = vmatprep.subr.mxu0 0.0
        %387 = vmatpush1.msra.mxu0 0.0
        %388 = vmatprep.subr.mxu0 0.0
        %389 = vmatpush1.msra.mxu0 0.0
        %390 = vmatprep.subr.mxu0 0.0
        %391 = vmatpush1.msra.mxu0 0.0
        %392 = vmatprep.subr.mxu0 0.0
        %393 = vmatpush1.msra.mxu0 0.0
        %394 = vmatprep.subr.mxu0 0.0
        %395 = vmatpush1.msra.mxu0 0.0
        %396 = vmatprep.subr.mxu0 0.0
        %397 = vmatpush1.msra.mxu0 0.0
        %398 = vmatprep.subr.mxu0 0.0
        %399 = vmatpush1.msra.mxu0 0.0
        %400 = vmatprep.subr.mxu0 0.0
        %401 = vmatpush1.msra.mxu0 0.0
        %402 = vmatprep.subr.mxu0 0.0
        %403 = vmatpush1.msra.mxu0 0.0
        %404 = vmatprep.subr.mxu0 0.0
        %405 = vmatpush1.msra.mxu0 0.0
        %406 = vmatprep.subr.mxu0 0.0
        %407 = vmatpush1.msra.mxu0 0.0
        %408 = vmatprep.subr.mxu0 0.0
        %409 = vmatpush1.msra.mxu0 0.0
        %410 = vmatprep.subr.mxu0 0.0
        %411 = vmatpush1.msra.mxu0 0.0
        %412 = vmatprep.subr.mxu0 0.0
        %413 = vmatpush1.msra.mxu0 0.0
        %414 = vmatprep.subr.mxu0 0.0
        %415 = vmatpush1.msra.mxu0 0.0
        %416 = vmatprep.subr.mxu0 0.0
        %417 = vmatpush1.msra.mxu0 0.0
        %418 = vmatprep.subr.mxu0 0.0
        %419 = vmatpush1.msra.mxu0 0.0
        %420 = vmatprep.mubr.f32.mxu0 0.0
        %421 = vmatmul.mubr.f32.gmra.mrb[0].mxu0 %v354
        %v422 = vpop.f32.mrb[0].mxu0
        %v423 = vadd.f32 %v351, %v422
        %v424 = vpop.f32.mrb[0].mxu0
        %v425 = vadd.f32 %v351, %v424
        %426 = vdwg.mxu0
        %vm427 = vcmask 1040384
        %v428 = vsel %vm427, %v423, -inf
        %v429 = vsel %vm427, %v425, -inf
        %v430 = vmax.f32 %v428, %v429
        %431 = vmax.xlane.f32.xlu0 %v430
        %v432 = vpop.xlane.xlu0 %431
        %v433 = vsub.f32 %v423, %v432
        %v434 = vsub.f32 %v425, %v432
        %v435 = vmul.f32 %v433, 1.442695
        %v436 = vpow.pop %v435
        %v437 = vmul.f32 %v434, 1.442695
        %v438 = vpow.pop %v437
        %v439 = vsel %vm427, %v436, 0.0
        %v440 = vsel %vm427, %v438, 0.0
        %v441 = vadd.f32 %v439, %v440
        %442 = vadd.xlane.f32.xlu0 %v441
        %v443 = vpop.xlane.xlu0 %442
        %v444 = vrcp.pop %v443
        %v445 = vmul.f32 %v443, %v444
        %v446 = vsub.f32 2.0, %v445
        %v447 = vmul.f32 %v444, %v446
        %v448 = vmul.f32 %v443, %v447
        %v449 = vsub.f32 2.0, %v448
        %v450 = vmul.f32 %v447, %v449
        %v451 = vlaneseq
        %v452 = vshrl.u32 %v451, 7
        %v453 = vsub.s32 0, %v452
        %v454 = vrot.slane %v436, %v453
        %v455 = vlaneseq
        %v456 = vshrl.u32 %v455, 7
        %v457 = vsub.s32 0, %v456
        %v458 = vrot.slane %v438, %v457
        %v459 = vmul.f32 %v346, %v454
        %v460 = vmul.f32 %v347, %v458
        %v461 = vadd.f32 %v459, %v460
        %462 = vadd.xlane.f32.xlu0 %v461
        %v463 = vpop.xlane.xlu0 %462
        %v464 = vlaneseq
        %v465 = vshrl.u32 %v464, 7
        %v466 = vsub.s32 0, %v465
        %v467 = vrot.slane %v450, %v466
        %v468 = vmul.f32 %v463, %v467
        %v469 = vld [vmem:[%s3] sm:$0xff]
        %v470 = vmul.f32 %v468, %v469
        %vm471 = vcmask 15360
        %v472 = vsel %vm471, %v470, 0.0
        %v473 = vrot.slane %v472, 4
        %v474 = vadd.f32 %v472, %v473
        %v475 = vrot.slane %v474, 2
        %v476 = vadd.f32 %v474, %v475
        %v477 = vrot.slane %v476, 1
        %v478 = vadd.f32 %v476, %v477
        %v479 = vld [vmem:[%s4] sm:$0x1]
        %v480 = vadd.f32 %v478, %v479
        %vm481 = vcmask 8192
        %v482 = vsel %vm481, %v480, 0.0
        %483 = vadd.xlane.f32.xlu0 %v482
        %v484 = vpop.xlane.xlu0 %483
        %v485 = vrcp.pop 2.0
        %v486 = vmul.f32 %v484, %v485
        %v487 = vsub.f32 %v480, %v486
        %v488 = vmul.f32 %v487, %v487
        %v489 = vsel %vm481, %v488, 0.0
        %490 = vadd.xlane.f32.xlu0 %v489
        %v491 = vpop.xlane.xlu0 %490
        %v492 = vmul.f32 %v491, %v485
        %v493 = vadd.f32 %v492, 1e-05
        %v494 = vrsqrt.pop %v493
        %v495 = vmul.f32 %v487, %v494
        %v496 = vld [vmem:[%s5] sm:$0x1]
        %v497 = vmul.f32 %v495, %v496
        %v498 = vld [vmem:[%s6] sm:$0x1]
        %v499 = vadd.f32 %v497, %v498
        %v500 = vmax.f32 %v499, 0.0
        %v501 = vld [vmem:[%s7] sm:$0xff]
        %v502 = vlaneseq
        %v503 = vshrl.u32 %v502, 7
        %v504 = vsub.s32 0, %v503
        %v505 = vrot.slane %v500, %v504
        %v506 = vmul.f32 %v505, %v501
        %v507 = vsel %vm471, %v506, 0.0
        %508 = vadd.xlane.f32.xlu0 %v507
        %v509 = vpop.xlane.xlu0 %508
        %v510 = vld [vmem:[%s8] sm:$0xff]
        %v511 = vadd.f32 %v509, %v510
        %v512 = vxor.u32 %v511, 2147483648
        %v513 = vmul.f32 %v512, 1.442695
        %v514 = vpow.pop %v513
        %v515 = vadd.f32 %v514, 1.0
        %v516 = vrcp.pop %v515
        %v517 = vmul.f32 1.0, %v516
        %v518 = vadd.f32 %v517, 1.0
        %520 = vset.pattern.permute.xlu0 0
        %521 = vperm.xlu0 %520, %v518
        %v522 = vpop.permute.xlu0 %521
        %v524 = vmul.f32 %v346, %v522
        %v525 = vmul.f32 %v347, %v522
        %526 = vst [vmem:[%s340] sm:$0xff] %v524
        %527 = vst [vmem:[%s340 + $0x8] sm:$0xff] %v525
        %s528 = sand.u32 %s228, 1
        %s529 = scalar_lea.sflag [#allocation5], %s528
        %s530 = sand.u32 %s228, 1
        %s531 = smul.addr %s530, 16
        %s532 = scalar_lea.vmem [#allocation6], %s531
        // Predicated region
        $region61: #{tpu_custom_call.1} parent=55 // pred_check
          %p533 = pneg %p238
        $region62: #{tpu_custom_call.1} parent=55 // pred_check_branch
          %535 = sbr.rel (%p533) target = $region64
        $region63: #{tpu_custom_call.1} parent=55 // pred_region
          %s537 = ssub.s32 256, 256
          %538 = vsyncadd %s529, %s537
          %s539 = smul.addr %s26, 2
          %s540 = smul.addr %s539, 128
          %s541 = scalar_lea.hbm %s9, %s540
          %s543 = sshll.u32 %s532, 4
          %s544 = int_to_ptr.vmem [resolvable:$true] %s543
          %546 = dma.vmem_to_hbm [thread:$0]  %s544, 256, %s541, %s529
        $region64: #{tpu_custom_call.1} parent=55 // pred_fallthru
          _
      $region56: #{tpu_custom_call.1} parent=5 // pred_fallthru
        _
      %p547 = scmp.le.s32.totalorder 2, %s21
      // Predicated region
      $region65: #{tpu_custom_call.1} parent=5 // pred_check
        %p548 = pneg %p547
      $region66: #{tpu_custom_call.1} parent=5 // pred_check_branch
        %550 = sbr.rel (%p548) target = $region68
      $region67: #{tpu_custom_call.1} parent=5 // pred_region
        %s551 = ssub.s32 %s21, 2
        // Predicated region
        $region69: #{tpu_custom_call.1} parent=67 // pred_check
          %p552 = pneg %p244
        $region70: #{tpu_custom_call.1} parent=67 // pred_check_branch
          %554 = sbr.rel (%p552) target = $region72
        $region71: #{tpu_custom_call.1} parent=67 // pred_region
          %s555 = sand.u32 %s229, 1
          %s556 = scalar_lea.sflag [#allocation5], %s555
          %s557 = sand.u32 %s229, 1
          %s558 = smul.addr %s557, 16
          %s559 = scalar_lea.vmem [#allocation6], %s558
          %560 = dma.done %s556, 256
        $region72: #{tpu_custom_call.1} parent=67 // pred_fallthru
          _
      $region68: #{tpu_custom_call.1} parent=5 // pred_fallthru
        _
    $region6: #{tpu_custom_call.1} parent=1 // loop_footer
      %s25 = sadd.s32 1, %s21
    $region7: #{tpu_custom_call.1} parent=1 // loop_footer_branch
      %20 = sbr.rel target = $region3
    $region8: #{tpu_custom_call.1} parent=1 // loop_exit
      _
    %561 = vsyncpa [#allocation4], 1
    %s562 = scalar_lea.sflag [#allocation4], 1
    %563 = vsyncpa %s562, 1
    %564 = vsyncpa [#allocation5], 1
    %s565 = scalar_lea.sflag [#allocation5], 1
    %566 = vsyncpa %s565, 1

</llo_original>
